<compile_context>
chip_gen: v6e
topology: v6e:2x2x1
jax: 0.10.0
libtpu: 0.0.40
codegen_flags: <defaults>
</compile_context>

<pallas_src>
import functools
import math

import jax
import jax.numpy as jnp
from jax import lax
from jax.experimental import pallas as pl
from jax.experimental.pallas import tpu as pltpu

_LANE_CHOICES = (1024, 512, 256, 128)
_TARGET_BLOCK_BYTES = 2 * 1024 * 1024   # per in/out block buffer (double-buffered in+out << 16 MiB)
_N_HASH_DRAWS = 2                       # 2 x 32 bits -> 4 x 16-bit uniforms per element (Irwin-Hall(4))


def _fmix32(h):
    """murmur3 32-bit finalizer — good avalanche, pure VPU integer ops."""
    h = h ^ (h >> 16)
    h = h * jnp.uint32(0x85EBCA6B)
    h = h ^ (h >> 13)
    h = h * jnp.uint32(0xC2B2AE35)
    h = h ^ (h >> 16)
    return h


def _gaussian_dropout_kernel(seed_ref, x_ref, o_ref, *, p):
    block_rows, lanes = x_ref.shape
    i = pl.program_id(0)

    # Global linear element index: unique across the whole flattened tensor and
    # across grid steps, so every tile draws an independent noise stream.
    row = lax.broadcasted_iota(jnp.int32, (block_rows, lanes), 0)
    col = lax.broadcasted_iota(jnp.int32, (block_rows, lanes), 1)
    gidx = (i * block_rows + row) * lanes + col            # int32; wrap is fine

    seed = seed_ref[0]                                      # int32 scalar (SMEM)
    key = (gidx + seed * jnp.int32(0x27D4EB2F)).astype(jnp.uint32)
    key = key * jnp.uint32(0x9E3779B9)                      # Weyl spread

    # Sum 2 * _N_HASH_DRAWS independent 16-bit uniforms (Irwin-Hall).
    m16 = jnp.uint32(0xFFFF)
    acc = jnp.zeros((block_rows, lanes), jnp.uint32)
    for d in range(_N_HASH_DRAWS):
        h = _fmix32(key ^ jnp.uint32(d * 0x68E31DA4))
        acc = acc + (h & m16) + (h >> 16)
    acc_f = acc.astype(jnp.int32).astype(jnp.float32)

    # Affine-map the Irwin-Hall sum to mean 0 / std 1, then to 1 + p * z.
    n_uniform = 2.0 * _N_HASH_DRAWS
    u_mean = 65535.0 / 2.0
    u_var = (65536.0 ** 2 - 1.0) / 12.0
    std = math.sqrt(n_uniform * u_var)
    a = jnp.float32(p / std)
    b = jnp.float32(1.0 - p * (n_uniform * u_mean) / std)
    factor = acc_f * a + b                                  # == 1 + p * z

    x = x_ref[...].astype(jnp.float32)
    o_ref[...] = (x * factor).astype(o_ref.dtype)


def gaussian_dropout(x, p: float, seed, training: bool = True):
    """JAX/Pallas equivalent of GaussianDropout.forward (NCHW or any shape)."""
    if not training:
        return x  # eval mode: identity

    orig_shape = x.shape
    orig_dtype = x.dtype
    n = int(x.size)
    flat = x.reshape(-1)

    # Lane-dense 2D slab.  Prefer a lane width that divides n exactly so no
    # wrapper-side pad / slice copies are needed (each is a full HBM round trip).
    lanes = None
    for w in _LANE_CHOICES:
        if n % w == 0:
            lanes = w
            break
    if lanes is None:
        lanes = 512
        padded_n = -(-n // lanes) * lanes
        flat = jnp.pad(flat, (0, padded_n - n))
    else:
        padded_n = n
    rows = padded_n // lanes
    x2d = flat.reshape(rows, lanes)

    # ~2 MiB blocks per buffer: double-buffered (in + out) stays well inside the
    # default scoped-VMEM limits on v5e (16 MiB) / v6e (32 MiB) / v7x (32 MiB).
    itemsize = jnp.dtype(orig_dtype).itemsize
    target_rows = max(32, _TARGET_BLOCK_BYTES // (lanes * itemsize))
    target_rows = (target_rows // 32) * 32      # multiple of 32 sublanes: fine for f32/bf16/int8 tiling
    block_rows = rows if rows <= target_rows else target_rows
    grid = (pl.cdiv(rows, block_rows),)

    seed_arr = jnp.asarray([seed], dtype=jnp.int32)

    out2d = pl.pallas_call(
        functools.partial(_gaussian_dropout_kernel, p=float(p)),
        out_shape=jax.ShapeDtypeStruct((rows, lanes), orig_dtype),
        grid_spec=pltpu.PrefetchScalarGridSpec(
            num_scalar_prefetch=1,
            grid=grid,
            in_specs=[pl.BlockSpec((block_rows, lanes), lambda i, s: (i, 0))],
            out_specs=pl.BlockSpec((block_rows, lanes), lambda i, s: (i, 0)),
        ),
        compiler_params=pltpu.CompilerParams(
            dimension_semantics=("parallel",),
        ),
    )(seed_arr, x2d)

    out = out2d
    if padded_n != n:
        out = out.reshape(-1)[:n]
    return out.reshape(orig_shape)


if __name__ == "__main__":
    key = jax.random.PRNGKey(0)
    # small NCHW input consistent with a conv-net feature map
    x = jax.random.normal(key, (2, 4, 16, 16), dtype=jnp.float32)

    p = 0.3
    y = gaussian_dropout(x, p=p, seed=0, training=True)
    y = jax.block_until_ready(y)

    assert y.shape == x.shape and y.dtype == x.dtype

    # sanity: implied multiplicative noise y/x ~ N(1, p^2)
    ratio = (y / jnp.where(jnp.abs(x) < 1e-6, 1.0, x)).reshape(-1)
    mean_r = float(jnp.mean(ratio))
    std_r = float(jnp.std(ratio))
    assert abs(mean_r - 1.0) < 0.1, mean_r
    assert abs(std_r - p) < 0.15, std_r

    # different seeds give different noise
    y2 = jax.block_until_ready(gaussian_dropout(x, p=p, seed=1, training=True))
    assert not bool(jnp.allclose(y, y2))

    # eval mode is identity
    y_eval = gaussian_dropout(x, p=p, seed=0, training=False)
    assert bool(jnp.all(y_eval == x))

    print("KERNEL_OK")
</pallas_src>

<mosaic_0001>
module attributes {stable_mosaic.version = 11 : i64} {
  func.func @_gaussian_dropout_kernel(%arg0: i32, %arg1: memref<1xi32, #tpu.memory_space<smem>>, %arg2: memref<2x1024xf32, #tpu.memory_space<vmem>>, %arg3: memref<2x1024xf32, #tpu.memory_space<vmem>>) attributes {dimension_semantics = [#tpu.dimension_semantics<parallel>], iteration_bounds = array<i64: 1>, scalar_prefetch = 1 : i64, scratch_operands = 0 : i64, tpu.core_type = #tpu.core_type<tc>, window_params = [{transform_indices = @transform_0, window_bounds = array<i64: 2, 1024>}, {transform_indices = @transform_1, window_bounds = array<i64: 2, 1024>}]} {
    %0 = tpu.iota {dimensions = array<i32: 0>} : vector<2x1024xi32>
    %1 = tpu.iota {dimensions = array<i32: 1>} : vector<2x1024xi32>
    %c2_i32 = arith.constant 2 : i32
    %2 = arith.muli %arg0, %c2_i32 : i32
    %3 = vector.broadcast %2 : i32 to vector<2x1024xi32>
    %4 = arith.addi %3, %0 : vector<2x1024xi32>
    %c1024_i32 = arith.constant 1024 : i32
    %5 = vector.broadcast %c1024_i32 : i32 to vector<2x1024xi32>
    %6 = arith.muli %4, %5 : vector<2x1024xi32>
    %7 = arith.addi %6, %1 : vector<2x1024xi32>
    %c0 = arith.constant 0 : index
    %8 = memref.load %arg1[%c0] : memref<1xi32, #tpu.memory_space<smem>>
    %c668265263_i32 = arith.constant 668265263 : i32
    %9 = arith.muli %8, %c668265263_i32 : i32
    %10 = vector.broadcast %9 : i32 to vector<2x1024xi32>
    %11 = arith.addi %7, %10 : vector<2x1024xi32>
    %c-1640531527_i32 = arith.constant -1640531527 : i32
    %12 = vector.broadcast %c-1640531527_i32 : i32 to vector<2x1024xi32>
    %13 = arith.muli %11, %12 : vector<2x1024xi32>
    %c0_i32 = arith.constant 0 : i32
    %14 = vector.broadcast %c0_i32 : i32 to vector<2x1024xi32>
    %c0_i32_0 = arith.constant 0 : i32
    %15 = vector.broadcast %c0_i32_0 : i32 to vector<2x1024xi32>
    %16 = arith.xori %13, %15 : vector<2x1024xi32>
    %c16_i32 = arith.constant 16 : i32
    %17 = vector.broadcast %c16_i32 : i32 to vector<2x1024xi32>
    %18 = arith.shrui %16, %17 : vector<2x1024xi32>
    %19 = arith.xori %16, %18 : vector<2x1024xi32>
    %c-2048144789_i32 = arith.constant -2048144789 : i32
    %20 = vector.broadcast %c-2048144789_i32 : i32 to vector<2x1024xi32>
    %21 = arith.muli %19, %20 : vector<2x1024xi32>
    %c13_i32 = arith.constant 13 : i32
    %22 = vector.broadcast %c13_i32 : i32 to vector<2x1024xi32>
    %23 = arith.shrui %21, %22 : vector<2x1024xi32>
    %24 = arith.xori %21, %23 : vector<2x1024xi32>
    %c-1028477387_i32 = arith.constant -1028477387 : i32
    %25 = vector.broadcast %c-1028477387_i32 : i32 to vector<2x1024xi32>
    %26 = arith.muli %24, %25 : vector<2x1024xi32>
    %c16_i32_1 = arith.constant 16 : i32
    %27 = vector.broadcast %c16_i32_1 : i32 to vector<2x1024xi32>
    %28 = arith.shrui %26, %27 : vector<2x1024xi32>
    %29 = arith.xori %26, %28 : vector<2x1024xi32>
    %c65535_i32 = arith.constant 65535 : i32
    %30 = vector.broadcast %c65535_i32 : i32 to vector<2x1024xi32>
    %31 = arith.andi %29, %30 : vector<2x1024xi32>
    %32 = arith.addi %14, %31 : vector<2x1024xi32>
    %c16_i32_2 = arith.constant 16 : i32
    %33 = vector.broadcast %c16_i32_2 : i32 to vector<2x1024xi32>
    %34 = arith.shrui %29, %33 : vector<2x1024xi32>
    %35 = arith.addi %32, %34 : vector<2x1024xi32>
    %c1759714724_i32 = arith.constant 1759714724 : i32
    %36 = vector.broadcast %c1759714724_i32 : i32 to vector<2x1024xi32>
    %37 = arith.xori %13, %36 : vector<2x1024xi32>
    %c16_i32_3 = arith.constant 16 : i32
    %38 = vector.broadcast %c16_i32_3 : i32 to vector<2x1024xi32>
    %39 = arith.shrui %37, %38 : vector<2x1024xi32>
    %40 = arith.xori %37, %39 : vector<2x1024xi32>
    %c-2048144789_i32_4 = arith.constant -2048144789 : i32
    %41 = vector.broadcast %c-2048144789_i32_4 : i32 to vector<2x1024xi32>
    %42 = arith.muli %40, %41 : vector<2x1024xi32>
    %c13_i32_5 = arith.constant 13 : i32
    %43 = vector.broadcast %c13_i32_5 : i32 to vector<2x1024xi32>
    %44 = arith.shrui %42, %43 : vector<2x1024xi32>
    %45 = arith.xori %42, %44 : vector<2x1024xi32>
    %c-1028477387_i32_6 = arith.constant -1028477387 : i32
    %46 = vector.broadcast %c-1028477387_i32_6 : i32 to vector<2x1024xi32>
    %47 = arith.muli %45, %46 : vector<2x1024xi32>
    %c16_i32_7 = arith.constant 16 : i32
    %48 = vector.broadcast %c16_i32_7 : i32 to vector<2x1024xi32>
    %49 = arith.shrui %47, %48 : vector<2x1024xi32>
    %50 = arith.xori %47, %49 : vector<2x1024xi32>
    %c65535_i32_8 = arith.constant 65535 : i32
    %51 = vector.broadcast %c65535_i32_8 : i32 to vector<2x1024xi32>
    %52 = arith.andi %50, %51 : vector<2x1024xi32>
    %53 = arith.addi %35, %52 : vector<2x1024xi32>
    %c16_i32_9 = arith.constant 16 : i32
    %54 = vector.broadcast %c16_i32_9 : i32 to vector<2x1024xi32>
    %55 = arith.shrui %50, %54 : vector<2x1024xi32>
    %56 = arith.addi %53, %55 : vector<2x1024xi32>
    %57 = arith.sitofp %56 : vector<2x1024xi32> to vector<2x1024xf32>
    %cst = arith.constant 7.92869923E-6 : f32
    %58 = vector.broadcast %cst : f32 to vector<2x1024xf32>
    %59 = arith.mulf %57, %58 : vector<2x1024xf32>
    %cst_10 = arith.constant -0.039214626 : f32
    %60 = vector.broadcast %cst_10 : f32 to vector<2x1024xf32>
    %61 = arith.addf %59, %60 : vector<2x1024xf32>
    %c0_11 = arith.constant 0 : index
    %c0_12 = arith.constant 0 : index
    %62 = vector.load %arg2[%c0_11, %c0_12] : memref<2x1024xf32, #tpu.memory_space<vmem>>, vector<2x1024xf32>
    %63 = arith.mulf %62, %61 : vector<2x1024xf32>
    %c0_13 = arith.constant 0 : index
    %c0_14 = arith.constant 0 : index
    %64 = vector.load %arg3[%c0_13, %c0_14] : memref<2x1024xf32, #tpu.memory_space<vmem>>, vector<2x1024xf32>
    tpu.vector_store %arg3[%c0_13, %c0_14], %63 {strides = array<i32>} : memref<2x1024xf32, #tpu.memory_space<vmem>>, vector<2x1024xf32>,
    return
  }
  func.func @transform_0(%arg0: i32, %arg1: memref<1xi32, #tpu.memory_space<smem>>) -> (i32, i32) {
    %c0_i32 = arith.constant 0 : i32
    %c0_i32_0 = arith.constant 0 : i32
    return %arg0, %c0_i32 : i32, i32
  }
  func.func @transform_1(%arg0: i32, %arg1: memref<1xi32, #tpu.memory_space<smem>>) -> (i32, i32) {
    %c0_i32 = arith.constant 0 : i32
    %c0_i32_0 = arith.constant 0 : i32
    return %arg0, %c0_i32 : i32, i32
  }
}

</mosaic_0001>

<llo_original>
// kernel: tpu_custom_call.1
$region0: #{tpu_custom_call.1}
  #allocation0 [shape = 'u32[]', space=smem, size = 0x4, offset = 0x4, fixed_abs, tag = 'smem constant byte address 0x4 - core index']
  #allocation1 [shape = 'u32[144,128]{1,0:T(1,128)}', space=vmem, size = 0x12000, scoped, tag = 'internal scratch']
  #allocation2 [shape = 's32[1]{0}', space=sflag, size = 0x4, scoped, tag = 'scoped memory for tpu_custom_call.1']
  #allocation3 [shape = 's32[1]{0:T(128)S(6)}', space=smem, size = 0x200, scoped, tag = 'prefetched SMEM operand 0']
  %s0 = inlined_call_operand.<no memory space> [shape: s32[1], index: 0, kind: input, shape index: {}]
  %s1 = inlined_call_operand.hbm [shape: f32[2,1024], index: 1, kind: input, shape index: {}]
  %s2 = inlined_call_operand.hbm [shape: f32[2,1024], index: 2, kind: output, shape index: {}]
  %s3 = sld [smem:[#allocation0]]
  $region18: #{tpu_custom_call.1} parent=0
    _
  %s5 = ssub.s32 1, %s3
  %s6 = scalar_select 0, %s5, %s3
  %7 = sst [smem:[#allocation3]] %s0
  $region1: #{tpu_custom_call.1} parent=0
    #allocation4 [shape = 'u8[8192]{0}', space=vmem, size = 0x2000, scoped, tag = 'input window, operand 1, single buffered']
    #allocation5 [shape = 's32[1]{0}', space=sflag, size = 0x4, scoped, tag = 'scoped memory for tpu_custom_call.1']
    #allocation6 [shape = 's32[1]{0}', space=sflag, size = 0x4, scoped, tag = 'scoped memory for tpu_custom_call.1']
    #allocation7 [shape = 'u8[8192]{0}', space=vmem, size = 0x2000, scoped, tag = 'output window, operand 0, single buffered']
    %8 = vsyncpa [#allocation5], 0
    %9 = vsyncpa [#allocation6], 0
    // Predicated region
    $region2: #{tpu_custom_call.1} parent=1 // pred_check
      _
    $region3: #{tpu_custom_call.1} parent=1 // pred_check_branch
      %11 = sbr.rel (0) target = $region5
    $region4: #{tpu_custom_call.1} parent=1 // pred_region
      %s13 = ssub.s32 256, 256
      %14 = vsyncadd [#allocation5], %s13
      %s16 = sshll.u32 [#allocation4], 4
      %s17 = int_to_ptr.vmem [resolvable:$true] %s16
      %19 = dma.hbm_to_vmem [thread:$0]  %s1, 256, %s17, [#allocation5]
    $region5: #{tpu_custom_call.1} parent=1 // pred_fallthru
      _
    // Predicated region
    $region6: #{tpu_custom_call.1} parent=1 // pred_check
      _
    $region7: #{tpu_custom_call.1} parent=1 // pred_check_branch
      %21 = sbr.rel (0) target = $region9
    $region8: #{tpu_custom_call.1} parent=1 // pred_region
      %22 = dma.done [#allocation5], 256
    $region9: #{tpu_custom_call.1} parent=1 // pred_fallthru
      _
    %v23 = vlaneseq
    %v24 = vshrl.u32 %v23, 7
    %v25 = vlaneseq
    %v26 = vand.u32 %v25, 127
    %v27 = vadd.s32 %v26, 128
    %v28 = vadd.s32 %v26, 256
    %v29 = vadd.s32 %v26, 384
    %v30 = vadd.s32 %v26, 512
    %v31 = vadd.s32 %v26, 640
    %v32 = vadd.s32 %v26, 768
    %v33 = vadd.s32 %v26, 896
    %s34 = smul.u32 0, 2
    %v35 = vstv %s34
    %v36 = vadd.s32 %v35, %v24
    %v37 = vmul.u32 %v36, 1024
    %v38 = vadd.s32 %v37, %v26
    %v39 = vadd.s32 %v37, %v27
    %v40 = vadd.s32 %v37, %v28
    %v41 = vadd.s32 %v37, %v29
    %v42 = vadd.s32 %v37, %v30
    %v43 = vadd.s32 %v37, %v31
    %v44 = vadd.s32 %v37, %v32
    %v45 = vadd.s32 %v37, %v33
    %s46 = sld [smem:[#allocation3]]
    %s47 = smul.u32 %s46, 668265263
    %v48 = vstv %s47
    %v49 = vadd.s32 %v38, %v48
    %v50 = vadd.s32 %v39, %v48
    %v51 = vadd.s32 %v40, %v48
    %v52 = vadd.s32 %v41, %v48
    %v53 = vadd.s32 %v42, %v48
    %v54 = vadd.s32 %v43, %v48
    %v55 = vadd.s32 %v44, %v48
    %v56 = vadd.s32 %v45, %v48
    %v57 = vmul.u32 %v49, 2654435769
    %v58 = vmul.u32 %v50, 2654435769
    %v59 = vmul.u32 %v51, 2654435769
    %v60 = vmul.u32 %v52, 2654435769
    %v61 = vmul.u32 %v53, 2654435769
    %v62 = vmul.u32 %v54, 2654435769
    %v63 = vmul.u32 %v55, 2654435769
    %v64 = vmul.u32 %v56, 2654435769
    %v65 = vshrl.u32 %v57, 16
    %v66 = vshrl.u32 %v58, 16
    %v67 = vshrl.u32 %v59, 16
    %v68 = vshrl.u32 %v60, 16
    %v69 = vshrl.u32 %v61, 16
    %v70 = vshrl.u32 %v62, 16
    %v71 = vshrl.u32 %v63, 16
    %v72 = vshrl.u32 %v64, 16
    %v73 = vxor.u32 %v57, %v65
    %v74 = vxor.u32 %v58, %v66
    %v75 = vxor.u32 %v59, %v67
    %v76 = vxor.u32 %v60, %v68
    %v77 = vxor.u32 %v61, %v69
    %v78 = vxor.u32 %v62, %v70
    %v79 = vxor.u32 %v63, %v71
    %v80 = vxor.u32 %v64, %v72
    %v81 = vmul.u32 %v73, 2246822507
    %v82 = vmul.u32 %v74, 2246822507
    %v83 = vmul.u32 %v75, 2246822507
    %v84 = vmul.u32 %v76, 2246822507
    %v85 = vmul.u32 %v77, 2246822507
    %v86 = vmul.u32 %v78, 2246822507
    %v87 = vmul.u32 %v79, 2246822507
    %v88 = vmul.u32 %v80, 2246822507
    %v89 = vshrl.u32 %v81, 13
    %v90 = vshrl.u32 %v82, 13
    %v91 = vshrl.u32 %v83, 13
    %v92 = vshrl.u32 %v84, 13
    %v93 = vshrl.u32 %v85, 13
    %v94 = vshrl.u32 %v86, 13
    %v95 = vshrl.u32 %v87, 13
    %v96 = vshrl.u32 %v88, 13
    %v97 = vxor.u32 %v81, %v89
    %v98 = vxor.u32 %v82, %v90
    %v99 = vxor.u32 %v83, %v91
    %v100 = vxor.u32 %v84, %v92
    %v101 = vxor.u32 %v85, %v93
    %v102 = vxor.u32 %v86, %v94
    %v103 = vxor.u32 %v87, %v95
    %v104 = vxor.u32 %v88, %v96
    %v105 = vmul.u32 %v97, 3266489909
    %v106 = vmul.u32 %v98, 3266489909
    %v107 = vmul.u32 %v99, 3266489909
    %v108 = vmul.u32 %v100, 3266489909
    %v109 = vmul.u32 %v101, 3266489909
    %v110 = vmul.u32 %v102, 3266489909
    %v111 = vmul.u32 %v103, 3266489909
    %v112 = vmul.u32 %v104, 3266489909
    %v113 = vshrl.u32 %v105, 16
    %v114 = vshrl.u32 %v106, 16
    %v115 = vshrl.u32 %v107, 16
    %v116 = vshrl.u32 %v108, 16
    %v117 = vshrl.u32 %v109, 16
    %v118 = vshrl.u32 %v110, 16
    %v119 = vshrl.u32 %v111, 16
    %v120 = vshrl.u32 %v112, 16
    %v121 = vxor.u32 %v105, %v113
    %v122 = vxor.u32 %v106, %v114
    %v123 = vxor.u32 %v107, %v115
    %v124 = vxor.u32 %v108, %v116
    %v125 = vxor.u32 %v109, %v117
    %v126 = vxor.u32 %v110, %v118
    %v127 = vxor.u32 %v111, %v119
    %v128 = vxor.u32 %v112, %v120
    %v129 = vand.u32 %v121, 65535
    %v130 = vand.u32 %v122, 65535
    %v131 = vand.u32 %v123, 65535
    %v132 = vand.u32 %v124, 65535
    %v133 = vand.u32 %v125, 65535
    %v134 = vand.u32 %v126, 65535
    %v135 = vand.u32 %v127, 65535
    %v136 = vand.u32 %v128, 65535
    %v137 = vshrl.u32 %v121, 16
    %v138 = vshrl.u32 %v122, 16
    %v139 = vshrl.u32 %v123, 16
    %v140 = vshrl.u32 %v124, 16
    %v141 = vshrl.u32 %v125, 16
    %v142 = vshrl.u32 %v126, 16
    %v143 = vshrl.u32 %v127, 16
    %v144 = vshrl.u32 %v128, 16
    %v145 = vadd.s32 %v129, %v137
    %v146 = vadd.s32 %v130, %v138
    %v147 = vadd.s32 %v131, %v139
    %v148 = vadd.s32 %v132, %v140
    %v149 = vadd.s32 %v133, %v141
    %v150 = vadd.s32 %v134, %v142
    %v151 = vadd.s32 %v135, %v143
    %v152 = vadd.s32 %v136, %v144
    %v153 = vxor.u32 %v57, 1759714724
    %v154 = vxor.u32 %v58, 1759714724
    %v155 = vxor.u32 %v59, 1759714724
    %v156 = vxor.u32 %v60, 1759714724
    %v157 = vxor.u32 %v61, 1759714724
    %v158 = vxor.u32 %v62, 1759714724
    %v159 = vxor.u32 %v63, 1759714724
    %v160 = vxor.u32 %v64, 1759714724
    %v161 = vshrl.u32 %v153, 16
    %v162 = vshrl.u32 %v154, 16
    %v163 = vshrl.u32 %v155, 16
    %v164 = vshrl.u32 %v156, 16
    %v165 = vshrl.u32 %v157, 16
    %v166 = vshrl.u32 %v158, 16
    %v167 = vshrl.u32 %v159, 16
    %v168 = vshrl.u32 %v160, 16
    %v169 = vxor.u32 %v153, %v161
    %v170 = vxor.u32 %v154, %v162
    %v171 = vxor.u32 %v155, %v163
    %v172 = vxor.u32 %v156, %v164
    %v173 = vxor.u32 %v157, %v165
    %v174 = vxor.u32 %v158, %v166
    %v175 = vxor.u32 %v159, %v167
    %v176 = vxor.u32 %v160, %v168
    %v177 = vmul.u32 %v169, 2246822507
    %v178 = vmul.u32 %v170, 2246822507
    %v179 = vmul.u32 %v171, 2246822507
    %v180 = vmul.u32 %v172, 2246822507
    %v181 = vmul.u32 %v173, 2246822507
    %v182 = vmul.u32 %v174, 2246822507
    %v183 = vmul.u32 %v175, 2246822507
    %v184 = vmul.u32 %v176, 2246822507
    %v185 = vshrl.u32 %v177, 13
    %v186 = vshrl.u32 %v178, 13
    %v187 = vshrl.u32 %v179, 13
    %v188 = vshrl.u32 %v180, 13
    %v189 = vshrl.u32 %v181, 13
    %v190 = vshrl.u32 %v182, 13
    %v191 = vshrl.u32 %v183, 13
    %v192 = vshrl.u32 %v184, 13
    %v193 = vxor.u32 %v177, %v185
    %v194 = vxor.u32 %v178, %v186
    %v195 = vxor.u32 %v179, %v187
    %v196 = vxor.u32 %v180, %v188
    %v197 = vxor.u32 %v181, %v189
    %v198 = vxor.u32 %v182, %v190
    %v199 = vxor.u32 %v183, %v191
    %v200 = vxor.u32 %v184, %v192
    %v201 = vmul.u32 %v193, 3266489909
    %v202 = vmul.u32 %v194, 3266489909
    %v203 = vmul.u32 %v195, 3266489909
    %v204 = vmul.u32 %v196, 3266489909
    %v205 = vmul.u32 %v197, 3266489909
    %v206 = vmul.u32 %v198, 3266489909
    %v207 = vmul.u32 %v199, 3266489909
    %v208 = vmul.u32 %v200, 3266489909
    %v209 = vshrl.u32 %v201, 16
    %v210 = vshrl.u32 %v202, 16
    %v211 = vshrl.u32 %v203, 16
    %v212 = vshrl.u32 %v204, 16
    %v213 = vshrl.u32 %v205, 16
    %v214 = vshrl.u32 %v206, 16
    %v215 = vshrl.u32 %v207, 16
    %v216 = vshrl.u32 %v208, 16
    %v217 = vxor.u32 %v201, %v209
    %v218 = vxor.u32 %v202, %v210
    %v219 = vxor.u32 %v203, %v211
    %v220 = vxor.u32 %v204, %v212
    %v221 = vxor.u32 %v205, %v213
    %v222 = vxor.u32 %v206, %v214
    %v223 = vxor.u32 %v207, %v215
    %v224 = vxor.u32 %v208, %v216
    %v225 = vand.u32 %v217, 65535
    %v226 = vand.u32 %v218, 65535
    %v227 = vand.u32 %v219, 65535
    %v228 = vand.u32 %v220, 65535
    %v229 = vand.u32 %v221, 65535
    %v230 = vand.u32 %v222, 65535
    %v231 = vand.u32 %v223, 65535
    %v232 = vand.u32 %v224, 65535
    %v233 = vadd.s32 %v145, %v225
    %v234 = vadd.s32 %v146, %v226
    %v235 = vadd.s32 %v147, %v227
    %v236 = vadd.s32 %v148, %v228
    %v237 = vadd.s32 %v149, %v229
    %v238 = vadd.s32 %v150, %v230
    %v239 = vadd.s32 %v151, %v231
    %v240 = vadd.s32 %v152, %v232
    %v241 = vshrl.u32 %v217, 16
    %v242 = vshrl.u32 %v218, 16
    %v243 = vshrl.u32 %v219, 16
    %v244 = vshrl.u32 %v220, 16
    %v245 = vshrl.u32 %v221, 16
    %v246 = vshrl.u32 %v222, 16
    %v247 = vshrl.u32 %v223, 16
    %v248 = vshrl.u32 %v224, 16
    %v249 = vadd.s32 %v233, %v241
    %v250 = vadd.s32 %v234, %v242
    %v251 = vadd.s32 %v235, %v243
    %v252 = vadd.s32 %v236, %v244
    %v253 = vadd.s32 %v237, %v245
    %v254 = vadd.s32 %v238, %v246
    %v255 = vadd.s32 %v239, %v247
    %v256 = vadd.s32 %v240, %v248
    %v257 = vcvt.s32.f32 %v249
    %v258 = vcvt.s32.f32 %v250
    %v259 = vcvt.s32.f32 %v251
    %v260 = vcvt.s32.f32 %v252
    %v261 = vcvt.s32.f32 %v253
    %v262 = vcvt.s32.f32 %v254
    %v263 = vcvt.s32.f32 %v255
    %v264 = vcvt.s32.f32 %v256
    %v265 = vmul.f32 %v257, 7.928699e-06
    %v266 = vmul.f32 %v258, 7.928699e-06
    %v267 = vmul.f32 %v259, 7.928699e-06
    %v268 = vmul.f32 %v260, 7.928699e-06
    %v269 = vmul.f32 %v261, 7.928699e-06
    %v270 = vmul.f32 %v262, 7.928699e-06
    %v271 = vmul.f32 %v263, 7.928699e-06
    %v272 = vmul.f32 %v264, 7.928699e-06
    %v273 = vadd.f32 %v265, -0.039214626
    %v274 = vadd.f32 %v266, -0.039214626
    %v275 = vadd.f32 %v267, -0.039214626
    %v276 = vadd.f32 %v268, -0.039214626
    %v277 = vadd.f32 %v269, -0.039214626
    %v278 = vadd.f32 %v270, -0.039214626
    %v279 = vadd.f32 %v271, -0.039214626
    %v280 = vadd.f32 %v272, -0.039214626
    %v281 = vld [vmem:[#allocation4] sm:$0xff]
    %v282 = vld [vmem:[#allocation4 + $0x8] sm:$0xff]
    %v291 = vcombine.low %v273, %v274
    %v292 = vcombine.low %v275, %v276
    %v294 = vunpack.c.l.s4 1983009808
    %v295 = vunpack.c.0.s8 %v294
    %v296 = vlaneseq
    %v297 = vshrl.u32 %v296, 7
    %v298 = vsub.s32 %v295, %v297
    %v299 = vrot.slane %v291, %v298
    %v301 = vunpack.c.l.s4 1983009808
    %v302 = vunpack.c.0.s8 %v301
    %v303 = vlaneseq
    %v304 = vshrl.u32 %v303, 7
    %v305 = vsub.s32 %v302, %v304
    %v306 = vrot.slane %v292, %v305
    %v307 = vcombine.low %v299, %v306
    %v308 = vcombine.low %v277, %v278
    %v309 = vcombine.low %v279, %v280
    %v311 = vunpack.c.l.s4 1983009808
    %v312 = vunpack.c.0.s8 %v311
    %v313 = vlaneseq
    %v314 = vshrl.u32 %v313, 7
    %v315 = vsub.s32 %v312, %v314
    %v316 = vrot.slane %v308, %v315
    %v318 = vunpack.c.l.s4 1983009808
    %v319 = vunpack.c.0.s8 %v318
    %v320 = vlaneseq
    %v321 = vshrl.u32 %v320, 7
    %v322 = vsub.s32 %v319, %v321
    %v323 = vrot.slane %v309, %v322
    %v324 = vcombine.low %v316, %v323
    %v327 = vmul.f32 %v281, %v307
    %v328 = vmul.f32 %v282, %v324
    %329 = vst [vmem:[#allocation7] sm:$0xff] %v327
    %330 = vst [vmem:[#allocation7 + $0x8] sm:$0xff] %v328
    // Predicated region
    $region10: #{tpu_custom_call.1} parent=1 // pred_check
      _
    $region11: #{tpu_custom_call.1} parent=1 // pred_check_branch
      %332 = sbr.rel (0) target = $region13
    $region12: #{tpu_custom_call.1} parent=1 // pred_region
      %s334 = ssub.s32 256, 256
      %335 = vsyncadd [#allocation6], %s334
      %s337 = sshll.u32 [#allocation7], 4
      %s338 = int_to_ptr.vmem [resolvable:$true] %s337
      %340 = dma.vmem_to_hbm [thread:$0]  %s338, 256, %s2, [#allocation6]
    $region13: #{tpu_custom_call.1} parent=1 // pred_fallthru
      _
    // Predicated region
    $region14: #{tpu_custom_call.1} parent=1 // pred_check
      _
    $region15: #{tpu_custom_call.1} parent=1 // pred_check_branch
      %342 = sbr.rel (0) target = $region17
    $region16: #{tpu_custom_call.1} parent=1 // pred_region
      %343 = dma.done [#allocation6], 256
    $region17: #{tpu_custom_call.1} parent=1 // pred_fallthru
      _
    %344 = vsyncpa [#allocation5], 1
    %345 = vsyncpa [#allocation6], 1

</llo_original>
